<compile_context>
chip_gen: v5e
topology: v5e:2x2
jax: 0.10.0
libtpu: 0.0.40
codegen_flags: <defaults>
</compile_context>

<pallas_src>
import functools

import jax
import jax.numpy as jnp
from jax.experimental import pallas as pl
from jax.experimental.pallas import tpu as pltpu


# Layout of the single 1-D SMEM output vector (slots 5..7 are padding).
_I2T, _T2I, _MMD, _INORM, _TNORM = 0, 1, 2, 3, 4


# ----------------------------------------------------------------------------
# Fused kernel: cosine triplet-ranking losses + MMD(RBF) + norm bookkeeping
# ----------------------------------------------------------------------------
def _fused_loss_kernel(img_ref, txt_ref, out_ref,
                       *, margin, set_per_img, gamma, compute_mmd):
    P = set_per_img

    xf = img_ref[...]                         # (N_i, D) f32, unpadded
    yf = txt_ref[...]                         # (N_t, D) f32
    n_i, d = xf.shape
    n_t = yf.shape[0]

    ones_row = jnp.ones((1, d), jnp.float32)

    if compute_mmd:
        # One Gram pass for xx / xy / yy:  Z = [x; y],  G = Z @ Z^T
        # (bf16 MXU operands, f32 accumulation).  Sub-block slices are small
        # lane/sublane-offset copies — acceptable at this size.
        zf = jnp.concatenate([xf, yf], axis=0)                      # (N_i+N_t, D)
        z_bf = zf.astype(jnp.bfloat16)
        gram = jax.lax.dot_general(z_bf, z_bf, (((1,), (1,)), ((), ())),
                                   preferred_element_type=jnp.float32)
        xx = gram[:n_i, :n_i]
        xy = gram[:n_i, n_i:]
        yy = gram[n_i:, n_i:]

        # Squared row norms: column form via one lane reduction over Z, row
        # form via one ones-row MXU contraction (no in-kernel transposes).
        sq_z_col = jnp.sum(zf * zf, axis=-1, keepdims=True)         # (N, 1) f32
        sq_z_row = jax.lax.dot_general(ones_row, zf * zf,
                                       (((1,), (1,)), ((), ())),
                                       preferred_element_type=jnp.float32)  # (1, N)
        sq_x_col, sq_y_col = sq_z_col[:n_i], sq_z_col[n_i:]
        sq_x_row, sq_y_row = sq_z_row[:, :n_i], sq_z_row[:, n_i:]
    else:
        x_bf = xf.astype(jnp.bfloat16)
        y_bf = yf.astype(jnp.bfloat16)
        xy = jax.lax.dot_general(x_bf, y_bf, (((1,), (1,)), ((), ())),
                                 preferred_element_type=jnp.float32)        # (N_i, N_t)
        sq_x_col = jnp.sum(xf * xf, axis=-1, keepdims=True)                 # (N_i, 1)
        sq_y_row = jax.lax.dot_general(ones_row, yf * yf,
                                       (((1,), (1,)), ((), ())),
                                       preferred_element_type=jnp.float32)  # (1, N_t)

    # Cosine similarity: l2norm folded into the matmul output via EUP rsqrt.
    inv_x = jax.lax.rsqrt(jnp.maximum(sq_x_col, 1e-24))
    inv_y = jax.lax.rsqrt(jnp.maximum(sq_y_row, 1e-24))
    sim = xy * inv_x * inv_y                                                # (N_i, N_t)

    # Positive/negative masks: text column j is a positive of image row i iff
    # i*P <= j < (i+1)*P  (mirrors eye(N_i).repeat(1, P) in the reference).
    row = jax.lax.broadcasted_iota(jnp.int32, (n_i, n_t), 0)
    col = jax.lax.broadcasted_iota(jnp.int32, (n_i, n_t), 1)
    rp = row * P
    pos_mask = jnp.logical_and(col >= rp, col < rp + P)
    neg_f = jnp.where(pos_mask, 0.0, 1.0)
    masked_pos = jnp.where(pos_mask, sim, 0.0)

    # ---- t2i: positive of text column j lives at image row j // P ----------
    # (silently assumes exactly one positive image row per text column, which
    #  holds for the block-diagonal layout above)
    pos_row = jnp.sum(masked_pos, axis=0, keepdims=True)                    # (1, N_t)
    t2i_elem = jnp.maximum(margin + sim - pos_row, 0.0) * neg_f
    t2i = jnp.sum(t2i_elem) / float(n_t * (n_i - 1))

    # ---- i2t: one hinge pass per positive index p -------------------------
    # Positive p of image row i sits at column i*P + p; extract it with an
    # exact-f32 masked lane reduction (XLU slot, free filler at this size).
    # TODO(synk): for large P switch to lax.fori_loop(..., unroll=True) or a
    # single bf16 MXU pass against an iota-built 0/1 selector.
    ms = sim + margin
    acc = jnp.zeros_like(sim)
    for p in range(P):                      # static, small; pure VPU/XLU work
        pos_p = jnp.sum(jnp.where(col == rp + p, sim, 0.0),
                        axis=-1, keepdims=True)                             # (N_i, 1)
        acc = acc + jnp.maximum(ms - pos_p, 0.0)
    i2t = jnp.sum(acc * neg_f) / float(P * n_i * (n_t - P))
    # TODO(synk): semi_hard_triplet / max_violation branches not implemented
    # (default config uses plain mean-over-violations).

    out_ref[_I2T] = i2t
    out_ref[_T2I] = t2i
    out_ref[_INORM] = jnp.mean(jnp.sqrt(sq_x_col))

    # ---- MMD with RBF kernel on Euclidean distances (rbf_memory_efficient) -
    if compute_mmd:
        out_ref[_TNORM] = jnp.mean(jnp.sqrt(sq_y_col))

        def mean_rbf(sq_a_col, sq_b_row, ab):
            d2 = jnp.maximum(sq_a_col + sq_b_row - 2.0 * ab, 0.0)
            # TODO(synk): clamp d2 with a small eps if a backward pass is ever
            # added (sqrt at 0 on the xx/yy diagonals has infinite gradient).
            return jnp.mean(jnp.exp(-gamma * jnp.sqrt(d2)))   # sqrt/exp on EUP

        out_ref[_MMD] = (mean_rbf(sq_x_col, sq_x_row, xx)
                         - 2.0 * mean_rbf(sq_x_col, sq_y_row, xy)
                         + mean_rbf(sq_y_col, sq_y_row, yy))
    else:
        out_ref[_TNORM] = jnp.mean(jnp.sqrt(sq_y_row))
        out_ref[_MMD] = jnp.float32(0.0)


def _cost_estimate(n_i, n_t, d, compute_mmd):
    mm_elems = n_i * n_t + (n_i * n_i + n_t * n_t if compute_mmd else 0)
    flops = 2 * d * mm_elems + 2 * d * (n_i + n_t)       # Gram/xy + ones-row norms
    trans = 2 * (n_i + n_t)                              # rsqrt + sqrt (norms)
    if compute_mmd:
        trans += 2 * (n_i * n_i + n_i * n_t + n_t * n_t)  # sqrt + exp per pair
    bytes_accessed = 4 * d * (n_i + n_t) + 4 * 8
    return pl.CostEstimate(flops=int(flops), transcendentals=int(trans),
                           bytes_accessed=int(bytes_accessed))


@functools.partial(jax.jit,
                   static_argnames=("margin", "set_per_img", "gamma", "compute_mmd"))
def fused_losses(img_flat, txt_flat, *, margin, set_per_img, gamma, compute_mmd):
    """Returns (i2t, t2i, mmd, img_norm_mean, txt_norm_mean) device scalars."""
    n_i, d = img_flat.shape
    n_t = txt_flat.shape[0]
    if n_i * set_per_img != n_t:
        raise ValueError("txt rows must equal img rows * set_per_img")

    kernel = functools.partial(_fused_loss_kernel,
                               margin=float(margin),
                               set_per_img=int(set_per_img),
                               gamma=float(gamma),
                               compute_mmd=bool(compute_mmd))
    vmem = pl.BlockSpec(memory_space=pltpu.MemorySpace.VMEM)

    out = pl.pallas_call(
        kernel,
        out_shape=jax.ShapeDtypeStruct((8,), jnp.float32),   # 1-D SMEM: 32 bytes
        in_specs=[vmem, vmem],
        out_specs=pl.BlockSpec(memory_space=pltpu.MemorySpace.SMEM),
        cost_estimate=_cost_estimate(n_i, n_t, d, bool(compute_mmd)),
    )(img_flat.astype(jnp.float32), txt_flat.astype(jnp.float32))
    return out[_I2T], out[_T2I], out[_MMD], out[_INORM], out[_TNORM]


# ----------------------------------------------------------------------------
# Module wrapper (mirrors AsymmetricTripletLoss.forward)
# ----------------------------------------------------------------------------
class AsymmetricTripletLossPallas:
    def __init__(self, img_set_size, txt_set_size, *, margin=0.2,
                 img_num_embeds=2, txt_num_embeds=2, txt_per_img=5,
                 i2t_weight=1.0, t2i_weight=1.0, mmd_weight=0.0,
                 div_weight=0.0, unif_weight=0.0, qreg_weight=0.0,
                 semi_hard_triplet=False, max_violation=False,
                 reduction='mean'):
        if semi_hard_triplet or max_violation:
            raise NotImplementedError(
                "only the plain mean-over-violations triplet loss is fused")
        self.margin = margin
        self.img_num_embeds = img_num_embeds
        self.txt_num_embeds = txt_num_embeds
        self.txt_per_img = txt_per_img
        self.img_set_size, self.txt_set_size = img_set_size, txt_set_size
        self.set_per_img = int(txt_per_img * txt_num_embeds / txt_set_size)
        self.i2t_weight, self.t2i_weight = i2t_weight, t2i_weight
        self.mmd_weight = mmd_weight
        self.div_weight = div_weight
        self.unif_weight = unif_weight
        self.qreg_weight = qreg_weight
        self.reduction = reduction
        # Stored as device scalars (no per-step device->host sync).
        self.img_emb_norm = []
        self.txt_emb_norm = []

    def __call__(self, img_embs, txt_embs, img_r, txt_r,
                 img_query=None, txt_query=None):
        losses = dict()

        img_flat = img_embs.reshape(-1, img_embs.shape[-1])
        txt_flat = txt_embs.reshape(-1, txt_embs.shape[-1])

        i2t_loss, t2i_loss, mmd_loss, inorm, tnorm = fused_losses(
            img_flat, txt_flat,
            margin=self.margin, set_per_img=self.set_per_img,
            gamma=0.5, compute_mmd=self.mmd_weight > 0.0)

        # Bookkeeping kept on-device (call float() lazily if host values needed).
        self.img_emb_norm.append(inorm)
        self.txt_emb_norm.append(tnorm)

        losses['t2i_loss'] = t2i_loss
        losses['i2t_loss'] = i2t_loss
        loss = self.i2t_weight * i2t_loss + self.t2i_weight * t2i_loss

        # TODO(synk): div_weight / unif_weight / qreg_weight branches disabled
        # (weights are 0.0, same as the torch module default opt; the reference
        # batchwise_uniformity_loss also depends on an undefined `repeat`).

        if self.mmd_weight > 0.0:
            loss = loss + self.mmd_weight * mmd_loss
            losses['mmd_loss'] = mmd_loss

        return loss, losses


if __name__ == "__main__":
    key = jax.random.PRNGKey(0)
    k1, k2, k3, k4 = jax.random.split(key, 4)

    # Shapes consistent with the module:
    #   batch B=4 images, img_num_embeds=2                 -> N_img = 8
    #   txt_per_img=5, txt_num_embeds=2, txt_set_size=2    -> set_per_img = 5
    #   N_txt = N_img * set_per_img = 40 = (B*txt_per_img)*txt_num_embeds
    B, IMG_K, TXT_K, TXT_PER_IMG, D = 4, 2, 2, 5, 32

    img_embs = jax.random.normal(k1, (B, IMG_K, D), jnp.float32)
    txt_embs = jax.random.normal(k2, (B * TXT_PER_IMG, TXT_K, D), jnp.float32)
    img_r = jax.random.normal(k3, (B, IMG_K, D), jnp.float32)
    txt_r = jax.random.normal(k4, (B * TXT_PER_IMG, TXT_K, D), jnp.float32)

    criterion = AsymmetricTripletLossPallas(
        img_set_size=IMG_K, txt_set_size=TXT_K, margin=0.2,
        img_num_embeds=IMG_K, txt_num_embeds=TXT_K, txt_per_img=TXT_PER_IMG,
        i2t_weight=1.0, t2i_weight=1.0, mmd_weight=0.01)

    loss, losses = criterion(img_embs, txt_embs, img_r, txt_r)
    jax.block_until_ready(loss)
    for v in losses.values():
        jax.block_until_ready(v)
    print("KERNEL_OK")
</pallas_src>

<mosaic_0001>
module attributes {stable_mosaic.version = 11 : i64} {
  func.func @_fused_loss_kernel(%arg0: memref<8x32xf32, #tpu.memory_space<vmem>>, %arg1: memref<40x32xf32, #tpu.memory_space<vmem>>, %arg2: memref<8xf32, #tpu.memory_space<smem>>) attributes {dimension_semantics = [], scalar_prefetch = 0 : i64, scratch_operands = 0 : i64, tpu.core_type = #tpu.core_type<tc>} {
    %c0 = arith.constant 0 : index
    %c0_0 = arith.constant 0 : index
    %0 = vector.load %arg0[%c0, %c0_0] : memref<8x32xf32, #tpu.memory_space<vmem>>, vector<8x32xf32>
    %c0_1 = arith.constant 0 : index
    %c0_2 = arith.constant 0 : index
    %1 = vector.load %arg1[%c0_1, %c0_2] : memref<40x32xf32, #tpu.memory_space<vmem>>, vector<40x32xf32>
    %cst = arith.constant 1.000000e+00 : f32
    %2 = vector.broadcast %cst : f32 to vector<1x32xf32>
    %3 = tpu.concatenate %0, %1 in 0 : vector<8x32xf32>, vector<40x32xf32> -> vector<48x32xf32>
    %4 = arith.truncf %3 : vector<48x32xf32> to vector<48x32xbf16>
    %cst_3 = arith.constant dense<0.000000e+00> : vector<48x48xf32>
    %5 = tpu.matmul %4, %4, %cst_3 {dimension_numbers = #tpu.dot_dimension_numbers<[1], [1], [0], [0], [0, 0, 1, 0], [], []>} : vector<48x32xbf16>, vector<48x32xbf16>, vector<48x48xf32> -> vector<48x48xf32>
    %6 = vector.extract_strided_slice %5 {offsets = [0, 0], sizes = [8, 8], strides = [1, 1]} : vector<48x48xf32> to vector<8x8xf32>
    %7 = vector.extract_strided_slice %5 {offsets = [0, 8], sizes = [8, 40], strides = [1, 1]} : vector<48x48xf32> to vector<8x40xf32>
    %8 = vector.extract_strided_slice %5 {offsets = [8, 8], sizes = [40, 40], strides = [1, 1]} : vector<48x48xf32> to vector<40x40xf32>
    %9 = arith.mulf %3, %3 : vector<48x32xf32>
    %cst_4 = arith.constant dense<0.000000e+00> : vector<48xf32>
    %10 = vector.multi_reduction <add>, %9, %cst_4 [1] : vector<48x32xf32> to vector<48xf32>
    %11 = vector.shape_cast %10 : vector<48xf32> to vector<48x1xf32>
    %12 = arith.mulf %3, %3 : vector<48x32xf32>
    %cst_5 = arith.constant dense<0.000000e+00> : vector<1x48xf32>
    %13 = tpu.matmul %2, %12, %cst_5 {dimension_numbers = #tpu.dot_dimension_numbers<[1], [1], [0], [0], [0, 0, 1, 0], [], []>} : vector<1x32xf32>, vector<48x32xf32>, vector<1x48xf32> -> vector<1x48xf32>
    %14 = vector.extract_strided_slice %11 {offsets = [0, 0], sizes = [8, 1], strides = [1, 1]} : vector<48x1xf32> to vector<8x1xf32>
    %15 = vector.extract_strided_slice %11 {offsets = [8, 0], sizes = [40, 1], strides = [1, 1]} : vector<48x1xf32> to vector<40x1xf32>
    %16 = vector.extract_strided_slice %13 {offsets = [0, 0], sizes = [1, 8], strides = [1, 1]} : vector<1x48xf32> to vector<1x8xf32>
    %17 = vector.extract_strided_slice %13 {offsets = [0, 8], sizes = [1, 40], strides = [1, 1]} : vector<1x48xf32> to vector<1x40xf32>
    %cst_6 = arith.constant 1.000000e-24 : f32
    %18 = vector.broadcast %cst_6 : f32 to vector<8x1xf32>
    %19 = arith.maximumf %14, %18 : vector<8x1xf32>
    %20 = math.rsqrt %19 : vector<8x1xf32>
    %cst_7 = arith.constant 1.000000e-24 : f32
    %21 = vector.broadcast %cst_7 : f32 to vector<1x40xf32>
    %22 = arith.maximumf %17, %21 : vector<1x40xf32>
    %23 = math.rsqrt %22 : vector<1x40xf32>
    %24 = vector.broadcast %20 : vector<8x1xf32> to vector<8x40xf32>
    %25 = arith.mulf %7, %24 : vector<8x40xf32>
    %26 = vector.broadcast %23 : vector<1x40xf32> to vector<8x40xf32>
    %27 = arith.mulf %25, %26 : vector<8x40xf32>
    %28 = tpu.iota {dimensions = array<i32: 0>} : vector<8x40xi32>
    %29 = tpu.iota {dimensions = array<i32: 1>} : vector<8x40xi32>
    %c5_i32 = arith.constant 5 : i32
    %30 = vector.broadcast %c5_i32 : i32 to vector<8x40xi32>
    %31 = arith.muli %28, %30 : vector<8x40xi32>
    %32 = arith.cmpi sge, %29, %31 : vector<8x40xi32>
    %c5_i32_8 = arith.constant 5 : i32
    %33 = vector.broadcast %c5_i32_8 : i32 to vector<8x40xi32>
    %34 = arith.addi %31, %33 : vector<8x40xi32>
    %35 = arith.cmpi slt, %29, %34 : vector<8x40xi32>
    %36 = arith.andi %32, %35 : vector<8x40xi1>
    %cst_9 = arith.constant 0.000000e+00 : f32
    %cst_10 = arith.constant 1.000000e+00 : f32
    %37 = vector.broadcast %cst_9 : f32 to vector<8x40xf32>
    %38 = vector.broadcast %cst_10 : f32 to vector<8x40xf32>
    %39 = arith.select %36, %37, %38 : vector<8x40xi1>, vector<8x40xf32>
    %cst_11 = arith.constant 0.000000e+00 : f32
    %40 = vector.broadcast %cst_11 : f32 to vector<8x40xf32>
    %41 = arith.select %36, %27, %40 : vector<8x40xi1>, vector<8x40xf32>
    %cst_12 = arith.constant dense<0.000000e+00> : vector<40xf32>
    %42 = vector.multi_reduction <add>, %41, %cst_12 [0] : vector<8x40xf32> to vector<40xf32>
    %43 = vector.shape_cast %42 : vector<40xf32> to vector<1x40xf32>
    %cst_13 = arith.constant 2.000000e-01 : f32
    %44 = vector.broadcast %cst_13 : f32 to vector<8x40xf32>
    %45 = arith.addf %44, %27 : vector<8x40xf32>
    %46 = vector.broadcast %43 : vector<1x40xf32> to vector<8x40xf32>
    %47 = arith.subf %45, %46 : vector<8x40xf32>
    %cst_14 = arith.constant 0.000000e+00 : f32
    %48 = vector.broadcast %cst_14 : f32 to vector<8x40xf32>
    %49 = arith.maximumf %47, %48 : vector<8x40xf32>
    %50 = arith.mulf %49, %39 : vector<8x40xf32>
    %51 = vector.shape_cast %50 : vector<8x40xf32> to vector<1x8x40xf32>
    %cst_15 = arith.constant dense<0.000000e+00> : vector<1xf32>
    %52 = vector.multi_reduction <add>, %51, %cst_15 [1, 2] : vector<1x8x40xf32> to vector<1xf32>
    %53 = vector.shape_cast %52 : vector<1xf32> to vector<1x1x1xf32>
    %54 = vector.extract %53[0, 0, 0] : f32 from vector<1x1x1xf32>
    %cst_16 = arith.constant 2.800000e+02 : f32
    %55 = arith.divf %54, %cst_16 : f32
    %cst_17 = arith.constant 2.000000e-01 : f32
    %56 = vector.broadcast %cst_17 : f32 to vector<8x40xf32>
    %57 = arith.addf %27, %56 : vector<8x40xf32>
    %cst_18 = arith.constant 0.000000e+00 : f32
    %58 = vector.broadcast %cst_18 : f32 to vector<8x40xf32>
    %c0_i32 = arith.constant 0 : i32
    %59 = vector.broadcast %c0_i32 : i32 to vector<8x40xi32>
    %60 = arith.addi %31, %59 : vector<8x40xi32>
    %61 = arith.cmpi eq, %29, %60 : vector<8x40xi32>
    %cst_19 = arith.constant 0.000000e+00 : f32
    %62 = vector.broadcast %cst_19 : f32 to vector<8x40xf32>
    %63 = arith.select %61, %27, %62 : vector<8x40xi1>, vector<8x40xf32>
    %cst_20 = arith.constant dense<0.000000e+00> : vector<8xf32>
    %64 = vector.multi_reduction <add>, %63, %cst_20 [1] : vector<8x40xf32> to vector<8xf32>
    %65 = vector.shape_cast %64 : vector<8xf32> to vector<8x1xf32>
    %66 = vector.broadcast %65 : vector<8x1xf32> to vector<8x40xf32>
    %67 = arith.subf %57, %66 : vector<8x40xf32>
    %cst_21 = arith.constant 0.000000e+00 : f32
    %68 = vector.broadcast %cst_21 : f32 to vector<8x40xf32>
    %69 = arith.maximumf %67, %68 : vector<8x40xf32>
    %70 = arith.addf %58, %69 : vector<8x40xf32>
    %c1_i32 = arith.constant 1 : i32
    %71 = vector.broadcast %c1_i32 : i32 to vector<8x40xi32>
    %72 = arith.addi %31, %71 : vector<8x40xi32>
    %73 = arith.cmpi eq, %29, %72 : vector<8x40xi32>
    %cst_22 = arith.constant 0.000000e+00 : f32
    %74 = vector.broadcast %cst_22 : f32 to vector<8x40xf32>
    %75 = arith.select %73, %27, %74 : vector<8x40xi1>, vector<8x40xf32>
    %cst_23 = arith.constant dense<0.000000e+00> : vector<8xf32>
    %76 = vector.multi_reduction <add>, %75, %cst_23 [1] : vector<8x40xf32> to vector<8xf32>
    %77 = vector.shape_cast %76 : vector<8xf32> to vector<8x1xf32>
    %78 = vector.broadcast %77 : vector<8x1xf32> to vector<8x40xf32>
    %79 = arith.subf %57, %78 : vector<8x40xf32>
    %cst_24 = arith.constant 0.000000e+00 : f32
    %80 = vector.broadcast %cst_24 : f32 to vector<8x40xf32>
    %81 = arith.maximumf %79, %80 : vector<8x40xf32>
    %82 = arith.addf %70, %81 : vector<8x40xf32>
    %c2_i32 = arith.constant 2 : i32
    %83 = vector.broadcast %c2_i32 : i32 to vector<8x40xi32>
    %84 = arith.addi %31, %83 : vector<8x40xi32>
    %85 = arith.cmpi eq, %29, %84 : vector<8x40xi32>
    %cst_25 = arith.constant 0.000000e+00 : f32
    %86 = vector.broadcast %cst_25 : f32 to vector<8x40xf32>
    %87 = arith.select %85, %27, %86 : vector<8x40xi1>, vector<8x40xf32>
    %cst_26 = arith.constant dense<0.000000e+00> : vector<8xf32>
    %88 = vector.multi_reduction <add>, %87, %cst_26 [1] : vector<8x40xf32> to vector<8xf32>
    %89 = vector.shape_cast %88 : vector<8xf32> to vector<8x1xf32>
    %90 = vector.broadcast %89 : vector<8x1xf32> to vector<8x40xf32>
    %91 = arith.subf %57, %90 : vector<8x40xf32>
    %cst_27 = arith.constant 0.000000e+00 : f32
    %92 = vector.broadcast %cst_27 : f32 to vector<8x40xf32>
    %93 = arith.maximumf %91, %92 : vector<8x40xf32>
    %94 = arith.addf %82, %93 : vector<8x40xf32>
    %c3_i32 = arith.constant 3 : i32
    %95 = vector.broadcast %c3_i32 : i32 to vector<8x40xi32>
    %96 = arith.addi %31, %95 : vector<8x40xi32>
    %97 = arith.cmpi eq, %29, %96 : vector<8x40xi32>
    %cst_28 = arith.constant 0.000000e+00 : f32
    %98 = vector.broadcast %cst_28 : f32 to vector<8x40xf32>
    %99 = arith.select %97, %27, %98 : vector<8x40xi1>, vector<8x40xf32>
    %cst_29 = arith.constant dense<0.000000e+00> : vector<8xf32>
    %100 = vector.multi_reduction <add>, %99, %cst_29 [1] : vector<8x40xf32> to vector<8xf32>
    %101 = vector.shape_cast %100 : vector<8xf32> to vector<8x1xf32>
    %102 = vector.broadcast %101 : vector<8x1xf32> to vector<8x40xf32>
    %103 = arith.subf %57, %102 : vector<8x40xf32>
    %cst_30 = arith.constant 0.000000e+00 : f32
    %104 = vector.broadcast %cst_30 : f32 to vector<8x40xf32>
    %105 = arith.maximumf %103, %104 : vector<8x40xf32>
    %106 = arith.addf %94, %105 : vector<8x40xf32>
    %c4_i32 = arith.constant 4 : i32
    %107 = vector.broadcast %c4_i32 : i32 to vector<8x40xi32>
    %108 = arith.addi %31, %107 : vector<8x40xi32>
    %109 = arith.cmpi eq, %29, %108 : vector<8x40xi32>
    %cst_31 = arith.constant 0.000000e+00 : f32
    %110 = vector.broadcast %cst_31 : f32 to vector<8x40xf32>
    %111 = arith.select %109, %27, %110 : vector<8x40xi1>, vector<8x40xf32>
    %cst_32 = arith.constant dense<0.000000e+00> : vector<8xf32>
    %112 = vector.multi_reduction <add>, %111, %cst_32 [1] : vector<8x40xf32> to vector<8xf32>
    %113 = vector.shape_cast %112 : vector<8xf32> to vector<8x1xf32>
    %114 = vector.broadcast %113 : vector<8x1xf32> to vector<8x40xf32>
    %115 = arith.subf %57, %114 : vector<8x40xf32>
    %cst_33 = arith.constant 0.000000e+00 : f32
    %116 = vector.broadcast %cst_33 : f32 to vector<8x40xf32>
    %117 = arith.maximumf %115, %116 : vector<8x40xf32>
    %118 = arith.addf %106, %117 : vector<8x40xf32>
    %119 = arith.mulf %118, %39 : vector<8x40xf32>
    %120 = vector.shape_cast %119 : vector<8x40xf32> to vector<1x8x40xf32>
    %cst_34 = arith.constant dense<0.000000e+00> : vector<1xf32>
    %121 = vector.multi_reduction <add>, %120, %cst_34 [1, 2] : vector<1x8x40xf32> to vector<1xf32>
    %122 = vector.shape_cast %121 : vector<1xf32> to vector<1x1x1xf32>
    %123 = vector.extract %122[0, 0, 0] : f32 from vector<1x1x1xf32>
    %cst_35 = arith.constant 1.400000e+03 : f32
    %124 = arith.divf %123, %cst_35 : f32
    %c0_36 = arith.constant 0 : index
    %125 = memref.load %arg2[%c0_36] : memref<8xf32, #tpu.memory_space<smem>>
    memref.store %124, %arg2[%c0_36] : memref<8xf32, #tpu.memory_space<smem>>
    %c1 = arith.constant 1 : index
    %126 = memref.load %arg2[%c1] : memref<8xf32, #tpu.memory_space<smem>>
    memref.store %55, %arg2[%c1] : memref<8xf32, #tpu.memory_space<smem>>
    %127 = math.sqrt %14 : vector<8x1xf32>
    %128 = vector.shape_cast %127 : vector<8x1xf32> to vector<1x8x1xf32>
    %cst_37 = arith.constant dense<0.000000e+00> : vector<1xf32>
    %129 = vector.multi_reduction <add>, %128, %cst_37 [1, 2] : vector<1x8x1xf32> to vector<1xf32>
    %130 = vector.shape_cast %129 : vector<1xf32> to vector<1x1x1xf32>
    %131 = vector.extract %130[0, 0, 0] : f32 from vector<1x1x1xf32>
    %cst_38 = arith.constant 8.000000e+00 : f32
    %132 = arith.divf %131, %cst_38 : f32
    %c3 = arith.constant 3 : index
    %133 = memref.load %arg2[%c3] : memref<8xf32, #tpu.memory_space<smem>>
    memref.store %132, %arg2[%c3] : memref<8xf32, #tpu.memory_space<smem>>
    %134 = math.sqrt %15 : vector<40x1xf32>
    %135 = vector.shape_cast %134 : vector<40x1xf32> to vector<1x40x1xf32>
    %cst_39 = arith.constant dense<0.000000e+00> : vector<1xf32>
    %136 = vector.multi_reduction <add>, %135, %cst_39 [1, 2] : vector<1x40x1xf32> to vector<1xf32>
    %137 = vector.shape_cast %136 : vector<1xf32> to vector<1x1x1xf32>
    %138 = vector.extract %137[0, 0, 0] : f32 from vector<1x1x1xf32>
    %cst_40 = arith.constant 4.000000e+01 : f32
    %139 = arith.divf %138, %cst_40 : f32
    %c4 = arith.constant 4 : index
    %140 = memref.load %arg2[%c4] : memref<8xf32, #tpu.memory_space<smem>>
    memref.store %139, %arg2[%c4] : memref<8xf32, #tpu.memory_space<smem>>
    %141 = vector.broadcast %14 : vector<8x1xf32> to vector<8x8xf32>
    %142 = vector.broadcast %16 : vector<1x8xf32> to vector<8x8xf32>
    %143 = arith.addf %141, %142 : vector<8x8xf32>
    %cst_41 = arith.constant 2.000000e+00 : f32
    %144 = vector.broadcast %cst_41 : f32 to vector<8x8xf32>
    %145 = arith.mulf %144, %6 : vector<8x8xf32>
    %146 = arith.subf %143, %145 : vector<8x8xf32>
    %cst_42 = arith.constant 0.000000e+00 : f32
    %147 = vector.broadcast %cst_42 : f32 to vector<8x8xf32>
    %148 = arith.maximumf %146, %147 : vector<8x8xf32>
    %149 = math.sqrt %148 : vector<8x8xf32>
    %cst_43 = arith.constant -5.000000e-01 : f32
    %150 = vector.broadcast %cst_43 : f32 to vector<8x8xf32>
    %151 = arith.mulf %150, %149 : vector<8x8xf32>
    %152 = math.exp %151 : vector<8x8xf32>
    %153 = vector.shape_cast %152 : vector<8x8xf32> to vector<1x8x8xf32>
    %cst_44 = arith.constant dense<0.000000e+00> : vector<1xf32>
    %154 = vector.multi_reduction <add>, %153, %cst_44 [1, 2] : vector<1x8x8xf32> to vector<1xf32>
    %155 = vector.shape_cast %154 : vector<1xf32> to vector<1x1x1xf32>
    %156 = vector.extract %155[0, 0, 0] : f32 from vector<1x1x1xf32>
    %cst_45 = arith.constant 6.400000e+01 : f32
    %157 = arith.divf %156, %cst_45 : f32
    %158 = vector.broadcast %14 : vector<8x1xf32> to vector<8x40xf32>
    %159 = vector.broadcast %17 : vector<1x40xf32> to vector<8x40xf32>
    %160 = arith.addf %158, %159 : vector<8x40xf32>
    %cst_46 = arith.constant 2.000000e+00 : f32
    %161 = vector.broadcast %cst_46 : f32 to vector<8x40xf32>
    %162 = arith.mulf %161, %7 : vector<8x40xf32>
    %163 = arith.subf %160, %162 : vector<8x40xf32>
    %cst_47 = arith.constant 0.000000e+00 : f32
    %164 = vector.broadcast %cst_47 : f32 to vector<8x40xf32>
    %165 = arith.maximumf %163, %164 : vector<8x40xf32>
    %166 = math.sqrt %165 : vector<8x40xf32>
    %cst_48 = arith.constant -5.000000e-01 : f32
    %167 = vector.broadcast %cst_48 : f32 to vector<8x40xf32>
    %168 = arith.mulf %167, %166 : vector<8x40xf32>
    %169 = math.exp %168 : vector<8x40xf32>
    %170 = vector.shape_cast %169 : vector<8x40xf32> to vector<1x8x40xf32>
    %cst_49 = arith.constant dense<0.000000e+00> : vector<1xf32>
    %171 = vector.multi_reduction <add>, %170, %cst_49 [1, 2] : vector<1x8x40xf32> to vector<1xf32>
    %172 = vector.shape_cast %171 : vector<1xf32> to vector<1x1x1xf32>
    %173 = vector.extract %172[0, 0, 0] : f32 from vector<1x1x1xf32>
    %cst_50 = arith.constant 3.200000e+02 : f32
    %174 = arith.divf %173, %cst_50 : f32
    %cst_51 = arith.constant 2.000000e+00 : f32
    %175 = arith.mulf %cst_51, %174 : f32
    %176 = arith.subf %157, %175 : f32
    %177 = vector.broadcast %15 : vector<40x1xf32> to vector<40x40xf32>
    %178 = vector.broadcast %17 : vector<1x40xf32> to vector<40x40xf32>
    %179 = arith.addf %177, %178 : vector<40x40xf32>
    %cst_52 = arith.constant 2.000000e+00 : f32
    %180 = vector.broadcast %cst_52 : f32 to vector<40x40xf32>
    %181 = arith.mulf %180, %8 : vector<40x40xf32>
    %182 = arith.subf %179, %181 : vector<40x40xf32>
    %cst_53 = arith.constant 0.000000e+00 : f32
    %183 = vector.broadcast %cst_53 : f32 to vector<40x40xf32>
    %184 = arith.maximumf %182, %183 : vector<40x40xf32>
    %185 = math.sqrt %184 : vector<40x40xf32>
    %cst_54 = arith.constant -5.000000e-01 : f32
    %186 = vector.broadcast %cst_54 : f32 to vector<40x40xf32>
    %187 = arith.mulf %186, %185 : vector<40x40xf32>
    %188 = math.exp %187 : vector<40x40xf32>
    %189 = vector.shape_cast %188 : vector<40x40xf32> to vector<1x40x40xf32>
    %cst_55 = arith.constant dense<0.000000e+00> : vector<1xf32>
    %190 = vector.multi_reduction <add>, %189, %cst_55 [1, 2] : vector<1x40x40xf32> to vector<1xf32>
    %191 = vector.shape_cast %190 : vector<1xf32> to vector<1x1x1xf32>
    %192 = vector.extract %191[0, 0, 0] : f32 from vector<1x1x1xf32>
    %cst_56 = arith.constant 1.600000e+03 : f32
    %193 = arith.divf %192, %cst_56 : f32
    %194 = arith.addf %176, %193 : f32
    %c2 = arith.constant 2 : index
    %195 = memref.load %arg2[%c2] : memref<8xf32, #tpu.memory_space<smem>>
    memref.store %194, %arg2[%c2] : memref<8xf32, #tpu.memory_space<smem>>
    return
  }
}

</mosaic_0001>

<llo_original>
// kernel: fused_losses.1
$region0: #{fused_losses.1}
  #allocation0 [shape = 'u32[]', space=smem, size = 0x4, offset = 0x4, fixed_abs, tag = 'smem constant byte address 0x4 - core index']
  #allocation1 [shape = 'u32[72,128]{1,0:T(1,128)}', space=vmem, size = 0x9000, scoped, tag = 'internal scratch']
  %s0 = inlined_call_operand.vmem [shape: f32[8,32], index: 0, kind: input, shape index: {}]
  %s1 = inlined_call_operand.vmem [shape: f32[40,32], index: 1, kind: input, shape index: {}]
  %s2 = inlined_call_operand.vmem [shape: f32[8], index: 2, kind: output, shape index: {}]
  %s3 = sld [smem:[#allocation0]]
  $region18: #{fused_losses.1} parent=0
    _
  %s5 = ssub.s32 1, %s3
  %s6 = scalar_select 0, %s5, %s3
  $region1: #{fused_losses.1} parent=0
    #allocation2 [shape = 'u8[512]{0}', space=smem, size = 0x200, scoped, tag = 'output window, operand 0, single buffered']
    #allocation3 [shape = 's32[1]{0}', space=sflag, size = 0x4, scoped, tag = 'scoped memory for fused_losses.1']
    %7 = vsyncpa [#allocation3], 0
    // Predicated region
    $region2: #{fused_losses.1} parent=1 // pred_check
      _
    $region3: #{fused_losses.1} parent=1 // pred_check_branch
      %9 = sbr.rel (0) target = $region5
    $region4: #{fused_losses.1} parent=1 // pred_region
      _
    $region5: #{fused_losses.1} parent=1 // pred_fallthru
      _
    // Predicated region
    $region6: #{fused_losses.1} parent=1 // pred_check
      _
    $region7: #{fused_losses.1} parent=1 // pred_check_branch
      %11 = sbr.rel (0) target = $region9
    $region8: #{fused_losses.1} parent=1 // pred_region
      _
    $region9: #{fused_losses.1} parent=1 // pred_fallthru
      _
    %v13 = vld [vmem:[%s0] sm:$0xff]
    %v14 = vld [vmem:[%s1] sm:$0xff]
    %v15 = vld [vmem:[%s1 + $0x8] sm:$0xff]
    %v16 = vld [vmem:[%s1 + $0x10] sm:$0xff]
    %v17 = vld [vmem:[%s1 + $0x18] sm:$0xff]
    %v18 = vld [vmem:[%s1 + $0x20] sm:$0xff]
    %v19 = vpack.c.bf16 %v14, %v13
    %v20 = vpack.c.bf16 %v16, %v15
    %v21 = vpack.c.bf16 %v18, %v17
    %vm22 = vcmask 261120
    %v24 = vsel %vm22, %v19, 0
    %v27 = vsel %vm22, %v20, 0
    %v30 = vsel %vm22, %v21, 0
    %32 = vmatpush.bf16.xpose.msra.mxu0 0
    %33 = vmatpush.bf16.xpose.msra.mxu0 0
    %34 = vmatpush.bf16.xpose.msra.mxu0 0
    %35 = vmatpush.bf16.xpose.msra.mxu0 0
    %36 = vmatpush.bf16.xpose.msra.mxu0 0
    %37 = vmatpush.bf16.xpose.msra.mxu0 %v30
    %38 = vmatpush.bf16.xpose.msra.mxu0 %v27
    %39 = vmatpush.bf16.xpose.msra.mxu0 %v24
    %40 = vmatmul.bf16.gmra.mxu0 %v24
    %v41 = vpop.f32.mrf.mxu0
    %v42 = vadd.f32 0.0, %v41
    %v43 = vpop.f32.mrf.mxu0
    %v44 = vadd.f32 0.0, %v43
    %45 = vmatmul.bf16.gmra.mxu0 %v27
    %v46 = vpop.f32.mrf.mxu0
    %v47 = vadd.f32 0.0, %v46
    %v48 = vpop.f32.mrf.mxu0
    %v49 = vadd.f32 0.0, %v48
    %50 = vmatmul.bf16.gmra.mxu0 %v30
    %v51 = vpop.f32.mrf.mxu0
    %v52 = vadd.f32 0.0, %v51
    %v53 = vpop.f32.mrf.mxu0
    %v54 = vadd.f32 0.0, %v53
    %55 = vdwg.mxu0
    %v56 = vmul.f32 %v13, %v13
    %v57 = vmul.f32 %v14, %v14
    %v58 = vmul.f32 %v15, %v15
    %v59 = vmul.f32 %v16, %v16
    %v60 = vmul.f32 %v17, %v17
    %v61 = vmul.f32 %v18, %v18
    %v62 = vsel %vm22, %v56, 0.0
    %63 = vadd.xlane.f32.xlu0 %v62
    %v64 = vpop.xlane.xlu0 %63
    %v65 = vsel %vm22, %v57, 0.0
    %66 = vadd.xlane.f32.xlu0 %v65
    %v67 = vpop.xlane.xlu0 %66
    %v68 = vsel %vm22, %v58, 0.0
    %69 = vadd.xlane.f32.xlu0 %v68
    %v70 = vpop.xlane.xlu0 %69
    %v71 = vsel %vm22, %v59, 0.0
    %72 = vadd.xlane.f32.xlu0 %v71
    %v73 = vpop.xlane.xlu0 %72
    %v74 = vsel %vm22, %v60, 0.0
    %75 = vadd.xlane.f32.xlu0 %v74
    %v76 = vpop.xlane.xlu0 %75
    %v77 = vsel %vm22, %v61, 0.0
    %78 = vadd.xlane.f32.xlu0 %v77
    %v79 = vpop.xlane.xlu0 %78
    %v81 = vsel %vm22, 1.0, 0
    %v84 = vsel %vm22, %v56, 0
    %v87 = vsel %vm22, %v57, 0
    %v90 = vsel %vm22, %v58, 0
    %v93 = vsel %vm22, %v59, 0
    %v96 = vsel %vm22, %v60, 0
    %v99 = vsel %vm22, %v61, 0
    %101 = vmatpush.xpose.msra.mxu0 0.0
    %102 = vmatpush.xpose.msra.mxu0 0.0
    %103 = vmatpush.xpose.msra.mxu0 0.0
    %104 = vmatpush.xpose.msra.mxu0 0.0
    %105 = vmatpush.xpose.msra.mxu0 0.0
    %106 = vmatpush.xpose.msra.mxu0 0.0
    %107 = vmatpush.xpose.msra.mxu0 0.0
    %108 = vmatpush.xpose.msra.mxu0 0.0
    %109 = vmatpush.xpose.msra.mxu0 0.0
    %110 = vmatpush.xpose.msra.mxu0 0.0
    %111 = vmatpush.xpose.msra.mxu0 %v99
    %112 = vmatpush.xpose.msra.mxu0 %v96
    %113 = vmatpush.xpose.msra.mxu0 %v93
    %114 = vmatpush.xpose.msra.mxu0 %v90
    %115 = vmatpush.xpose.msra.mxu0 %v87
    %116 = vmatpush.xpose.msra.mxu0 %v84
    %117 = vmatmul.f32.gmra.mxu0 %v81
    %v118 = vpop.f32.mrf.mxu0
    %v119 = vadd.f32 0.0, %v118
    %120 = vdwg.mxu0
    %v121 = vmax.f32 %v64, 1e-24
    %v122 = vrsqrt.pop %v121
    %v123 = vmul.f32 %v122, %v121
    %v124 = vmul.f32 %v123, %v122
    %v125 = vmul.f32 0.5, %v124
    %v126 = vsub.f32 1.5, %v125
    %v127 = vmul.f32 %v122, %v126
    %vm128 = vweird.f32 %v121
    %vm129 = vweird.f32 %v122
    %vm130 = vmor %vm128, %vm129
    %v131 = vsel %vm130, %v122, %v127
    %v132 = vmax.f32 %v119, 1e-24
    %v133 = vrsqrt.pop %v132
    %v134 = vmul.f32 %v133, %v132
    %v135 = vmul.f32 %v134, %v133
    %v136 = vmul.f32 0.5, %v135
    %v137 = vsub.f32 1.5, %v136
    %v138 = vmul.f32 %v133, %v137
    %vm139 = vweird.f32 %v132
    %vm140 = vweird.f32 %v133
    %vm141 = vmor %vm139, %vm140
    %v142 = vsel %vm141, %v133, %v138
    %v143 = vmul.f32 %v42, %v131
    %v144 = vperm.slane %v142, 0
    %v145 = vmul.f32 %v143, %v144
    %v146 = vlaneseq
    %v147 = vshrl.u32 %v146, 7
    %v148 = vlaneseq
    %v149 = vand.u32 %v148, 127
    %v150 = vmul.u32 %v147, 5
    %vm151 = vcmp.ge.s32.totalorder %v149, %v150
    %v152 = vadd.s32 %v150, 5
    %vm153 = vcmp.lt.s32.totalorder %v149, %v152
    %vm154 = vmand %vm151, %vm153
    %v155 = vsel %vm154, 0.0, 1.0
    %157 = vrot.lane.b32.xlu0 %v145, 120
    %v158 = vpop.permute.xlu0 %157
    %v160 = vsel %vm154, %v158, 0.0
    %vm161 = vcmask 326656
    %v162 = vsel %vm161, %v160, 0.0
    %v163 = vrot.slane %v162, 4
    %v164 = vadd.f32 %v162, %v163
    %v165 = vrot.slane %v164, 2
    %v166 = vadd.f32 %v164, %v165
    %v167 = vrot.slane %v166, 1
    %v168 = vadd.f32 %v166, %v167
    %v169 = vadd.f32 %v145, 0.2
    %171 = vrot.lane.b32.xlu0 %v168, 8
    %v172 = vpop.permute.xlu0 %171
    %v174 = vsub.f32 %v169, %v172
    %v175 = vmax.f32 %v174, 0.0
    %177 = vrot.lane.b32.xlu0 %v155, 8
    %v178 = vpop.permute.xlu0 %177
    %v180 = vmul.f32 %v175, %v178
    %182 = vrot.lane.b32.xlu0 %v180, 120
    %v183 = vpop.permute.xlu0 %182
    %v185 = vsel %vm161, %v183, 0.0
    %186 = vadd.xlane.f32.xlu0 %v185
    %v187 = vpop.xlane.xlu0 %186
    %v188 = vrot.slane %v187, 4
    %v189 = vadd.f32 %v187, %v188
    %v190 = vrot.slane %v189, 2
    %v191 = vadd.f32 %v189, %v190
    %v192 = vrot.slane %v191, 1
    %v193 = vadd.f32 %v191, %v192
    %s194 = vtos %v193
    %v195 = vrcp.pop 280.0
    %v196 = vmul.f32 280.0, %v195
    %v197 = vsub.f32 1.0, %v196
    %v198 = vmul.f32 %v195, %v197
    %v199 = vadd.f32 %v195, %v198
    %vm200 = vweird.f32 %v195
    %v201 = vsel %vm200, %v195, %v199
    %s202 = vtos %v201
    %s203 = smul.f32 %s194, %s202
    %vm204 = vcmp.eq.s32.totalorder %v149, %v150
    %v205 = vsel %vm204, %v158, 0.0
    %v206 = vsel %vm161, %v205, 0.0
    %207 = vadd.xlane.f32.xlu0 %v206
    %v208 = vpop.xlane.xlu0 %207
    %v209 = vsub.f32 %v169, %v208
    %v210 = vmax.f32 %v209, 0.0
    %v211 = vadd.f32 %v210, 0.0
    %v212 = vadd.s32 %v150, 1
    %vm213 = vcmp.eq.s32.totalorder %v149, %v212
    %v214 = vsel %vm213, %v158, 0.0
    %v215 = vsel %vm161, %v214, 0.0
    %216 = vadd.xlane.f32.xlu0 %v215
    %v217 = vpop.xlane.xlu0 %216
    %v218 = vsub.f32 %v169, %v217
    %v219 = vmax.f32 %v218, 0.0
    %v220 = vadd.f32 %v211, %v219
    %v221 = vadd.s32 %v150, 2
    %vm222 = vcmp.eq.s32.totalorder %v149, %v221
    %v223 = vsel %vm222, %v158, 0.0
    %v224 = vsel %vm161, %v223, 0.0
    %225 = vadd.xlane.f32.xlu0 %v224
    %v226 = vpop.xlane.xlu0 %225
    %v227 = vsub.f32 %v169, %v226
    %v228 = vmax.f32 %v227, 0.0
    %v229 = vadd.f32 %v220, %v228
    %v230 = vadd.s32 %v150, 3
    %vm231 = vcmp.eq.s32.totalorder %v149, %v230
    %v232 = vsel %vm231, %v158, 0.0
    %v233 = vsel %vm161, %v232, 0.0
    %234 = vadd.xlane.f32.xlu0 %v233
    %v235 = vpop.xlane.xlu0 %234
    %v236 = vsub.f32 %v169, %v235
    %v237 = vmax.f32 %v236, 0.0
    %v238 = vadd.f32 %v229, %v237
    %v239 = vadd.s32 %v150, 4
    %vm240 = vcmp.eq.s32.totalorder %v149, %v239
    %v241 = vsel %vm240, %v158, 0.0
    %v242 = vsel %vm161, %v241, 0.0
    %243 = vadd.xlane.f32.xlu0 %v242
    %v244 = vpop.xlane.xlu0 %243
    %v245 = vsub.f32 %v169, %v244
    %v246 = vmax.f32 %v245, 0.0
    %v247 = vadd.f32 %v238, %v246
    %v248 = vmul.f32 %v247, %v178
    %250 = vrot.lane.b32.xlu0 %v248, 120
    %v251 = vpop.permute.xlu0 %250
    %v253 = vsel %vm161, %v251, 0.0
    %254 = vadd.xlane.f32.xlu0 %v253
    %v255 = vpop.xlane.xlu0 %254
    %v256 = vrot.slane %v255, 4
    %v257 = vadd.f32 %v255, %v256
    %v258 = vrot.slane %v257, 2
    %v259 = vadd.f32 %v257, %v258
    %v260 = vrot.slane %v259, 1
    %v261 = vadd.f32 %v259, %v260
    %s262 = vtos %v261
    %v263 = vrcp.pop 1400.0
    %v264 = vmul.f32 1400.0, %v263
    %v265 = vsub.f32 1.0, %v264
    %v266 = vmul.f32 %v263, %v265
    %v267 = vadd.f32 %v263, %v266
    %vm268 = vweird.f32 %v263
    %v269 = vsel %vm268, %v263, %v267
    %s270 = vtos %v269
    %s271 = smul.f32 %s262, %s270
    %s272 = scalar_lea.smem [#allocation2], 0
    %273 = sst [smem:[%s272]] %s271
    %s274 = scalar_lea.smem [#allocation2], 1
    %275 = sst [smem:[%s274]] %s203
    %v276 = vrsqrt.pop %v64
    %v277 = vmul.f32 %v276, %v64
    %v278 = vmul.f32 %v277, %v276
    %v279 = vmul.f32 0.5, %v278
    %v280 = vsub.f32 1.5, %v279
    %v281 = vmul.f32 %v276, %v280
    %v282 = vmul.f32 %v64, %v281
    %vm283 = vcmp.eq.f32.partialorder %v64, inf
    %v284 = vsel %vm283, %v64, %v282
    %vm285 = vcmp.eq.f32.partialorder %v64, 0.0
    %v286 = vand.u32 %v64, 2147483648
    %v287 = vsel %vm285, %v286, %v284
    %vm288 = vcmask 7168
    %v289 = vsel %vm288, %v287, 0.0
    %290 = vadd.xlane.f32.xlu0 %v289
    %v291 = vpop.xlane.xlu0 %290
    %v292 = vrot.slane %v291, 4
    %v293 = vadd.f32 %v291, %v292
    %v294 = vrot.slane %v293, 2
    %v295 = vadd.f32 %v293, %v294
    %v296 = vrot.slane %v295, 1
    %v297 = vadd.f32 %v295, %v296
    %s298 = vtos %v297
    %v299 = vrcp.pop 8.0
    %v300 = vmul.f32 8.0, %v299
    %v301 = vsub.f32 1.0, %v300
    %v302 = vmul.f32 %v299, %v301
    %v303 = vadd.f32 %v299, %v302
    %vm304 = vweird.f32 %v299
    %v305 = vsel %vm304, %v299, %v303
    %s306 = vtos %v305
    %s307 = smul.f32 %s298, %s306
    %s308 = scalar_lea.smem [#allocation2], 3
    %309 = sst [smem:[%s308]] %s307
    %v310 = vrsqrt.pop %v67
    %v311 = vmul.f32 %v310, %v67
    %v312 = vmul.f32 %v311, %v310
    %v313 = vmul.f32 0.5, %v312
    %v314 = vsub.f32 1.5, %v313
    %v315 = vmul.f32 %v310, %v314
    %v316 = vmul.f32 %v67, %v315
    %vm317 = vcmp.eq.f32.partialorder %v67, inf
    %v318 = vsel %vm317, %v67, %v316
    %vm319 = vcmp.eq.f32.partialorder %v67, 0.0
    %v320 = vand.u32 %v67, 2147483648
    %v321 = vsel %vm319, %v320, %v318
    %v322 = vrsqrt.pop %v70
    %v323 = vmul.f32 %v322, %v70
    %v324 = vmul.f32 %v323, %v322
    %v325 = vmul.f32 0.5, %v324
    %v326 = vsub.f32 1.5, %v325
    %v327 = vmul.f32 %v322, %v326
    %v328 = vmul.f32 %v70, %v327
    %vm329 = vcmp.eq.f32.partialorder %v70, inf
    %v330 = vsel %vm329, %v70, %v328
    %vm331 = vcmp.eq.f32.partialorder %v70, 0.0
    %v332 = vand.u32 %v70, 2147483648
    %v333 = vsel %vm331, %v332, %v330
    %v334 = vrsqrt.pop %v73
    %v335 = vmul.f32 %v334, %v73
    %v336 = vmul.f32 %v335, %v334
    %v337 = vmul.f32 0.5, %v336
    %v338 = vsub.f32 1.5, %v337
    %v339 = vmul.f32 %v334, %v338
    %v340 = vmul.f32 %v73, %v339
    %vm341 = vcmp.eq.f32.partialorder %v73, inf
    %v342 = vsel %vm341, %v73, %v340
    %vm343 = vcmp.eq.f32.partialorder %v73, 0.0
    %v344 = vand.u32 %v73, 2147483648
    %v345 = vsel %vm343, %v344, %v342
    %v346 = vrsqrt.pop %v76
    %v347 = vmul.f32 %v346, %v76
    %v348 = vmul.f32 %v347, %v346
    %v349 = vmul.f32 0.5, %v348
    %v350 = vsub.f32 1.5, %v349
    %v351 = vmul.f32 %v346, %v350
    %v352 = vmul.f32 %v76, %v351
    %vm353 = vcmp.eq.f32.partialorder %v76, inf
    %v354 = vsel %vm353, %v76, %v352
    %vm355 = vcmp.eq.f32.partialorder %v76, 0.0
    %v356 = vand.u32 %v76, 2147483648
    %v357 = vsel %vm355, %v356, %v354
    %v358 = vrsqrt.pop %v79
    %v359 = vmul.f32 %v358, %v79
    %v360 = vmul.f32 %v359, %v358
    %v361 = vmul.f32 0.5, %v360
    %v362 = vsub.f32 1.5, %v361
    %v363 = vmul.f32 %v358, %v362
    %v364 = vmul.f32 %v79, %v363
    %vm365 = vcmp.eq.f32.partialorder %v79, inf
    %v366 = vsel %vm365, %v79, %v364
    %vm367 = vcmp.eq.f32.partialorder %v79, 0.0
    %v368 = vand.u32 %v79, 2147483648
    %v369 = vsel %vm367, %v368, %v366
    %v370 = vsel %vm288, %v321, 0.0
    %v371 = vsel %vm288, %v333, 0.0
    %v372 = vadd.f32 %v370, %v371
    %v373 = vsel %vm288, %v345, 0.0
    %v374 = vadd.f32 %v372, %v373
    %v375 = vsel %vm288, %v357, 0.0
    %v376 = vadd.f32 %v374, %v375
    %v377 = vsel %vm288, %v369, 0.0
    %v378 = vadd.f32 %v376, %v377
    %379 = vadd.xlane.f32.xlu0 %v378
    %v380 = vpop.xlane.xlu0 %379
    %v381 = vrot.slane %v380, 4
    %v382 = vadd.f32 %v380, %v381
    %v383 = vrot.slane %v382, 2
    %v384 = vadd.f32 %v382, %v383
    %v385 = vrot.slane %v384, 1
    %v386 = vadd.f32 %v384, %v385
    %s387 = vtos %v386
    %v388 = vrcp.pop 40.0
    %v389 = vmul.f32 40.0, %v388
    %v390 = vsub.f32 1.0, %v389
    %v391 = vmul.f32 %v388, %v390
    %v392 = vadd.f32 %v388, %v391
    %vm393 = vweird.f32 %v388
    %v394 = vsel %vm393, %v388, %v392
    %s395 = vtos %v394
    %s396 = smul.f32 %s387, %s395
    %s397 = scalar_lea.smem [#allocation2], 4
    %398 = sst [smem:[%s397]] %s396
    %v399 = vperm.slane %v119, 0
    %v400 = vadd.f32 %v64, %v399
    %v401 = vmul.f32 %v42, 2.0
    %v402 = vsub.f32 %v400, %v401
    %v403 = vmax.f32 %v402, 0.0
    %v404 = vrsqrt.pop %v403
    %v405 = vmul.f32 %v404, %v403
    %v406 = vmul.f32 %v405, %v404
    %v407 = vmul.f32 0.5, %v406
    %v408 = vsub.f32 1.5, %v407
    %v409 = vmul.f32 %v404, %v408
    %v410 = vmul.f32 %v403, %v409
    %vm411 = vcmp.eq.f32.partialorder %v403, inf
    %v412 = vsel %vm411, %v403, %v410
    %vm413 = vcmp.eq.f32.partialorder %v403, 0.0
    %v414 = vand.u32 %v403, 2147483648
    %v415 = vsel %vm413, %v414, %v412
    %v416 = vmul.f32 %v415, -0.5
    %v417 = vmul.f32 %v416, 1.442695
    %v418 = vpow.pop %v417
    %vm419 = vcmask 64512
    %v420 = vsel %vm419, %v418, 0.0
    %421 = vadd.xlane.f32.xlu0 %v420
    %v422 = vpop.xlane.xlu0 %421
    %v423 = vrot.slane %v422, 4
    %v424 = vadd.f32 %v422, %v423
    %v425 = vrot.slane %v424, 2
    %v426 = vadd.f32 %v424, %v425
    %v427 = vrot.slane %v426, 1
    %v428 = vadd.f32 %v426, %v427
    %s429 = vtos %v428
    %v430 = vrcp.pop 64.0
    %v431 = vmul.f32 64.0, %v430
    %v432 = vsub.f32 1.0, %v431
    %v433 = vmul.f32 %v430, %v432
    %v434 = vadd.f32 %v430, %v433
    %vm435 = vweird.f32 %v430
    %v436 = vsel %vm435, %v430, %v434
    %s437 = vtos %v436
    %s438 = smul.f32 %s429, %s437
    %440 = vrot.lane.b32.xlu0 %v418, 120
    %v441 = vpop.permute.xlu0 %440
    %v443 = vsel %vm161, %v441, 0.0
    %444 = vadd.xlane.f32.xlu0 %v443
    %v445 = vpop.xlane.xlu0 %444
    %v446 = vrot.slane %v445, 4
    %v447 = vadd.f32 %v445, %v446
    %v448 = vrot.slane %v447, 2
    %v449 = vadd.f32 %v447, %v448
    %v450 = vrot.slane %v449, 1
    %v451 = vadd.f32 %v449, %v450
    %s452 = vtos %v451
    %v453 = vrcp.pop 320.0
    %v454 = vmul.f32 320.0, %v453
    %v455 = vsub.f32 1.0, %v454
    %v456 = vmul.f32 %v453, %v455
    %v457 = vadd.f32 %v453, %v456
    %vm458 = vweird.f32 %v453
    %v459 = vsel %vm458, %v453, %v457
    %s460 = vtos %v459
    %s461 = smul.f32 %s452, %s460
    %s462 = smul.f32 %s461, 2.0
    %s463 = ssub.f32 %s438, %s462
    %v464 = vadd.f32 %v67, %v399
    %v465 = vadd.f32 %v70, %v399
    %v466 = vadd.f32 %v73, %v399
    %v467 = vadd.f32 %v76, %v399
    %v468 = vadd.f32 %v79, %v399
    %v469 = vmul.f32 %v44, 2.0
    %v470 = vmul.f32 %v47, 2.0
    %v471 = vmul.f32 %v49, 2.0
    %v472 = vmul.f32 %v52, 2.0
    %v473 = vmul.f32 %v54, 2.0
    %v474 = vsub.f32 %v464, %v469
    %v475 = vsub.f32 %v465, %v470
    %v476 = vsub.f32 %v466, %v471
    %v477 = vsub.f32 %v467, %v472
    %v478 = vsub.f32 %v468, %v473
    %v479 = vmax.f32 %v474, 0.0
    %v480 = vmax.f32 %v475, 0.0
    %v481 = vmax.f32 %v476, 0.0
    %v482 = vmax.f32 %v477, 0.0
    %v483 = vmax.f32 %v478, 0.0
    %v484 = vrsqrt.pop %v479
    %v485 = vmul.f32 %v484, %v479
    %v486 = vmul.f32 %v485, %v484
    %v487 = vmul.f32 0.5, %v486
    %v488 = vsub.f32 1.5, %v487
    %v489 = vmul.f32 %v484, %v488
    %v490 = vmul.f32 %v479, %v489
    %vm491 = vcmp.eq.f32.partialorder %v479, inf
    %v492 = vsel %vm491, %v479, %v490
    %vm493 = vcmp.eq.f32.partialorder %v479, 0.0
    %v494 = vand.u32 %v479, 2147483648
    %v495 = vsel %vm493, %v494, %v492
    %v496 = vrsqrt.pop %v480
    %v497 = vmul.f32 %v496, %v480
    %v498 = vmul.f32 %v497, %v496
    %v499 = vmul.f32 0.5, %v498
    %v500 = vsub.f32 1.5, %v499
    %v501 = vmul.f32 %v496, %v500
    %v502 = vmul.f32 %v480, %v501
    %vm503 = vcmp.eq.f32.partialorder %v480, inf
    %v504 = vsel %vm503, %v480, %v502
    %vm505 = vcmp.eq.f32.partialorder %v480, 0.0
    %v506 = vand.u32 %v480, 2147483648
    %v507 = vsel %vm505, %v506, %v504
    %v508 = vrsqrt.pop %v481
    %v509 = vmul.f32 %v508, %v481
    %v510 = vmul.f32 %v509, %v508
    %v511 = vmul.f32 0.5, %v510
    %v512 = vsub.f32 1.5, %v511
    %v513 = vmul.f32 %v508, %v512
    %v514 = vmul.f32 %v481, %v513
    %vm515 = vcmp.eq.f32.partialorder %v481, inf
    %v516 = vsel %vm515, %v481, %v514
    %vm517 = vcmp.eq.f32.partialorder %v481, 0.0
    %v518 = vand.u32 %v481, 2147483648
    %v519 = vsel %vm517, %v518, %v516
    %v520 = vrsqrt.pop %v482
    %v521 = vmul.f32 %v520, %v482
    %v522 = vmul.f32 %v521, %v520
    %v523 = vmul.f32 0.5, %v522
    %v524 = vsub.f32 1.5, %v523
    %v525 = vmul.f32 %v520, %v524
    %v526 = vmul.f32 %v482, %v525
    %vm527 = vcmp.eq.f32.partialorder %v482, inf
    %v528 = vsel %vm527, %v482, %v526
    %vm529 = vcmp.eq.f32.partialorder %v482, 0.0
    %v530 = vand.u32 %v482, 2147483648
    %v531 = vsel %vm529, %v530, %v528
    %v532 = vrsqrt.pop %v483
    %v533 = vmul.f32 %v532, %v483
    %v534 = vmul.f32 %v533, %v532
    %v535 = vmul.f32 0.5, %v534
    %v536 = vsub.f32 1.5, %v535
    %v537 = vmul.f32 %v532, %v536
    %v538 = vmul.f32 %v483, %v537
    %vm539 = vcmp.eq.f32.partialorder %v483, inf
    %v540 = vsel %vm539, %v483, %v538
    %vm541 = vcmp.eq.f32.partialorder %v483, 0.0
    %v542 = vand.u32 %v483, 2147483648
    %v543 = vsel %vm541, %v542, %v540
    %v544 = vmul.f32 %v495, -0.5
    %v545 = vmul.f32 %v507, -0.5
    %v546 = vmul.f32 %v519, -0.5
    %v547 = vmul.f32 %v531, -0.5
    %v548 = vmul.f32 %v543, -0.5
    %v549 = vmul.f32 %v544, 1.442695
    %v550 = vpow.pop %v549
    %v551 = vmul.f32 %v545, 1.442695
    %v552 = vpow.pop %v551
    %v553 = vmul.f32 %v546, 1.442695
    %v554 = vpow.pop %v553
    %v555 = vmul.f32 %v547, 1.442695
    %v556 = vpow.pop %v555
    %v557 = vmul.f32 %v548, 1.442695
    %v558 = vpow.pop %v557
    %564 = vrot.lane.b32.xlu0 %v550, 120
    %v565 = vpop.permute.xlu0 %564
    %566 = vrot.lane.b32.xlu0 %v552, 120
    %v567 = vpop.permute.xlu0 %566
    %568 = vrot.lane.b32.xlu0 %v554, 120
    %v569 = vpop.permute.xlu0 %568
    %570 = vrot.lane.b32.xlu0 %v556, 120
    %v571 = vpop.permute.xlu0 %570
    %572 = vrot.lane.b32.xlu0 %v558, 120
    %v573 = vpop.permute.xlu0 %572
    %v579 = vsel %vm161, %v565, 0.0
    %v580 = vsel %vm161, %v567, 0.0
    %v581 = vadd.f32 %v579, %v580
    %v582 = vsel %vm161, %v569, 0.0
    %v583 = vadd.f32 %v581, %v582
    %v584 = vsel %vm161, %v571, 0.0
    %v585 = vadd.f32 %v583, %v584
    %v586 = vsel %vm161, %v573, 0.0
    %v587 = vadd.f32 %v585, %v586
    %588 = vadd.xlane.f32.xlu0 %v587
    %v589 = vpop.xlane.xlu0 %588
    %v590 = vrot.slane %v589, 4
    %v591 = vadd.f32 %v589, %v590
    %v592 = vrot.slane %v591, 2
    %v593 = vadd.f32 %v591, %v592
    %v594 = vrot.slane %v593, 1
    %v595 = vadd.f32 %v593, %v594
    %s596 = vtos %v595
    %v597 = vrcp.pop 1600.0
    %v598 = vmul.f32 1600.0, %v597
    %v599 = vsub.f32 1.0, %v598
    %v600 = vmul.f32 %v597, %v599
    %v601 = vadd.f32 %v597, %v600
    %vm602 = vweird.f32 %v597
    %v603 = vsel %vm602, %v597, %v601
    %s604 = vtos %v603
    %s605 = smul.f32 %s596, %s604
    %s606 = sadd.f32 %s463, %s605
    %s607 = scalar_lea.smem [#allocation2], 2
    %608 = sst [smem:[%s607]] %s606
    // Predicated region
    $region10: #{fused_losses.1} parent=1 // pred_check
      _
    $region11: #{fused_losses.1} parent=1 // pred_check_branch
      %610 = sbr.rel (0) target = $region13
    $region12: #{fused_losses.1} parent=1 // pred_region
      %612 = vsyncadd [#allocation3], 0
      %s614 = sshll.u32 %s2, 4
      %s615 = int_to_ptr.vmem [resolvable:$true] %s614
      %617 = dma.smem_to_vmem [#allocation2], 16, %s615, [#allocation3]
    $region13: #{fused_losses.1} parent=1 // pred_fallthru
      _
    // Predicated region
    $region14: #{fused_losses.1} parent=1 // pred_check
      _
    $region15: #{fused_losses.1} parent=1 // pred_check_branch
      %619 = sbr.rel (0) target = $region17
    $region16: #{fused_losses.1} parent=1 // pred_region
      %621 = dma.done [#allocation3], 16
    $region17: #{fused_losses.1} parent=1 // pred_fallthru
      _
    %622 = sfence
    %623 = vsyncpa [#allocation3], 1

</llo_original>
